<compile_context>
chip_gen: v7x
topology: tpu7x:2x2x1
jax: 0.10.0
libtpu: 0.0.40
codegen_flags: <defaults>
</compile_context>

<pallas_src>
import math

import jax
import jax.numpy as jnp
from jax.experimental import pallas as pl
from jax.experimental.pallas import tpu as pltpu


def _drop_path_kernel(scale_ref, x_ref, o_ref):
    # scale_ref: (bb, 1, 1) f32 -- per-sample scale (0.0 if dropped,
    #            1/keep_prob if kept), broadcast over the data tile.
    # x_ref/o_ref: (bb, tr, lanes) lane-dense tile.
    o_ref[...] = x_ref[...] * scale_ref[...].astype(o_ref.dtype)


def _round_up(v: int, m: int) -> int:
    return (v + m - 1) // m * m


# ~2 MiB per data block -> 2(in)+2(out) double buffers ~= 8 MiB VMEM: fits the
# default scoped VMEM limit on every chip generation (incl. v5e's 16 MiB).
_TARGET_BLOCK_BYTES = 2 * 1024 * 1024


def drop_path(x, drop_prob: float = 0.0, training: bool = False, *, key=None):
    """Pallas implementation of stochastic depth (per-sample drop)."""
    if drop_prob == 0.0 or not training:
        return x
    keep_prob = 1.0 - float(drop_prob)
    if key is None:
        # NOTE: callers should pass a distinct key per layer/call so that
        # different DropPath layers drop independent samples.
        key = jax.random.PRNGKey(0)

    B = x.shape[0]
    # Per-sample binary keep mask (B scalars -> essentially free on host side).
    u = jax.random.uniform(key, (B,), dtype=jnp.float32)
    mask = jnp.floor(keep_prob + u)                  # 1.0 w.p. keep_prob, else 0.0
    scale = (mask * (1.0 / keep_prob)).reshape(B, 1, 1).astype(jnp.float32)

    # Flatten each sample; pad (only when necessary) to a multiple of 128 so
    # the last block dim is a lane-dense multiple of 128.
    S = math.prod(x.shape[1:]) if x.ndim > 1 else 1
    S_pad = _round_up(max(S, 1), 128)
    x_flat = x.reshape(B, S)
    if S_pad != S:
        x_flat = jnp.pad(x_flat, ((0, 0), (0, S_pad - S)))

    itemsize = jnp.dtype(x.dtype).itemsize
    lanes = next(l for l in (2048, 1024, 512, 256, 128) if S_pad % l == 0)
    rows = S_pad // lanes
    per_sample_bytes = rows * lanes * itemsize

    if per_sample_bytes >= _TARGET_BLOCK_BYTES:
        # Large samples: one sample per block, tile the sublane (rows) axis.
        bb = 1
        tr = min(rows, max(8, (_TARGET_BLOCK_BYTES // (lanes * itemsize)) // 8 * 8))
    else:
        # Small samples: pack several whole samples into one block so per-step
        # pipeline overhead is amortized even when B is large and S is small.
        bb = int(min(B, max(1, _TARGET_BLOCK_BYTES // per_sample_bytes), 128))
        tr = rows                                    # full extent (always legal)

    grid = (pl.cdiv(B, bb), pl.cdiv(rows, tr))
    x3 = x_flat.reshape(B, rows, lanes)

    out = pl.pallas_call(
        _drop_path_kernel,
        out_shape=jax.ShapeDtypeStruct((B, rows, lanes), x.dtype),
        grid=grid,
        in_specs=[
            pl.BlockSpec((bb, 1, 1), lambda i, j: (i, 0, 0)),       # scales
            pl.BlockSpec((bb, tr, lanes), lambda i, j: (i, j, 0)),  # data
        ],
        out_specs=pl.BlockSpec((bb, tr, lanes), lambda i, j: (i, j, 0)),
        compiler_params=pltpu.CompilerParams(
            dimension_semantics=("parallel", "parallel")),
        cost_estimate=pl.CostEstimate(
            flops=int(x.size), transcendentals=0,
            bytes_accessed=int(2 * B * S_pad * itemsize + B * 4)),
    )(scale, x3)

    return out.reshape(B, S_pad)[:, :S].reshape(x.shape)


class DropPath:
    """Mirror of the PyTorch nn.Module (no parameters)."""

    def __init__(self, drop_prob=None):
        self.drop_prob = 0.0 if drop_prob is None else float(drop_prob)
        self.training = True

    def __call__(self, x, key=None):
        return drop_path(x, self.drop_prob, self.training, key=key)


def _check_drop_path(x, y, keep_prob):
    # Every sample must be either all-zeros or exactly x / keep_prob.
    for b in range(x.shape[0]):
        zeroed = bool(jnp.allclose(y[b], 0.0))
        kept = bool(jnp.allclose(y[b], x[b] / keep_prob, rtol=1e-5, atol=1e-5))
        assert zeroed or kept, f"sample {b}: unexpected drop-path output"


if __name__ == "__main__":
    root = jax.random.PRNGKey(0)
    drop_prob = 0.25
    keep_prob = 1.0 - drop_prob
    mod = DropPath(drop_prob=drop_prob)
    mod.training = True

    # 1) Small ViT-style tensor (batch, tokens, channels) -- packed-sample path.
    k_x, k_m = jax.random.split(root)
    x = jax.random.normal(k_x, (2, 8, 32), dtype=jnp.float32)
    y = jax.block_until_ready(mod(x, key=k_m))
    _check_drop_path(x, y, keep_prob)

    # 2) Larger batch of small samples (bb > 1 packing regime).
    k_x2, k_m2 = jax.random.split(jax.random.PRNGKey(1))
    x2 = jax.random.normal(k_x2, (16, 8, 32), dtype=jnp.float32)
    y2 = jax.block_until_ready(mod(x2, key=k_m2))
    _check_drop_path(x2, y2, keep_prob)

    # 3) Non-128-divisible sample size (exercises the pad/slice path).
    k_x3, k_m3 = jax.random.split(jax.random.PRNGKey(2))
    x3 = jax.random.normal(k_x3, (2, 7, 9), dtype=jnp.float32)
    y3 = jax.block_until_ready(mod(x3, key=k_m3))
    _check_drop_path(x3, y3, keep_prob)

    # 4) Medium sample (>= 2 MiB/sample) -- row-tiled (bb == 1) regime.
    k_x4, k_m4 = jax.random.split(jax.random.PRNGKey(3))
    x4 = jax.random.normal(k_x4, (2, 1024, 1024), dtype=jnp.float32)
    y4 = jax.block_until_ready(mod(x4, key=k_m4))
    _check_drop_path(x4, y4, keep_prob)

    # Identity paths (eval mode / drop_prob == 0) bypass the kernel.
    y_eval = jax.block_until_ready(drop_path(x, drop_prob, training=False))
    assert jnp.array_equal(y_eval, x)
    y_p0 = jax.block_until_ready(drop_path(x, 0.0, training=True))
    assert jnp.array_equal(y_p0, x)

    print("KERNEL_OK")
</pallas_src>

<mosaic_0001>
module attributes {stable_mosaic.version = 11 : i64} {
  func.func @_drop_path_kernel(%arg0: i32, %arg1: i32, %arg2: memref<2x1x1xf32, #tpu.memory_space<vmem>>, %arg3: memref<2x1x256xf32, #tpu.memory_space<vmem>>, %arg4: memref<2x1x256xf32, #tpu.memory_space<vmem>>) attributes {dimension_semantics = [#tpu.dimension_semantics<parallel>, #tpu.dimension_semantics<parallel>], iteration_bounds = array<i64: 1, 1>, scalar_prefetch = 0 : i64, scratch_operands = 0 : i64, tpu.core_type = #tpu.core_type<tc>, window_params = [{transform_indices = @transform_0, window_bounds = array<i64: 2, 1, 1>}, {transform_indices = @transform_1, window_bounds = array<i64: 2, 1, 256>}, {transform_indices = @transform_2, window_bounds = array<i64: 2, 1, 256>}]} {
    %c0 = arith.constant 0 : index
    %c0_0 = arith.constant 0 : index
    %c0_1 = arith.constant 0 : index
    %0 = vector.load %arg3[%c0, %c0_0, %c0_1] : memref<2x1x256xf32, #tpu.memory_space<vmem>>, vector<2x1x256xf32>
    %c0_2 = arith.constant 0 : index
    %c0_3 = arith.constant 0 : index
    %c0_4 = arith.constant 0 : index
    %1 = vector.load %arg2[%c0_2, %c0_3, %c0_4] : memref<2x1x1xf32, #tpu.memory_space<vmem>>, vector<2x1x1xf32>
    %2 = vector.broadcast %1 : vector<2x1x1xf32> to vector<2x1x256xf32>
    %3 = arith.mulf %0, %2 : vector<2x1x256xf32>
    %c0_5 = arith.constant 0 : index
    %c0_6 = arith.constant 0 : index
    %c0_7 = arith.constant 0 : index
    %4 = vector.load %arg4[%c0_5, %c0_6, %c0_7] : memref<2x1x256xf32, #tpu.memory_space<vmem>>, vector<2x1x256xf32>
    tpu.vector_store %arg4[%c0_5, %c0_6, %c0_7], %3 {strides = array<i32>} : memref<2x1x256xf32, #tpu.memory_space<vmem>>, vector<2x1x256xf32>,
    return
  }
  func.func @transform_0(%arg0: i32, %arg1: i32) -> (i32, i32, i32) {
    %c0_i32 = arith.constant 0 : i32
    %c0_i32_0 = arith.constant 0 : i32
    %c0_i32_1 = arith.constant 0 : i32
    return %arg0, %c0_i32, %c0_i32_0 : i32, i32, i32
  }
  func.func @transform_1(%arg0: i32, %arg1: i32) -> (i32, i32, i32) {
    %c0_i32 = arith.constant 0 : i32
    %c0_i32_0 = arith.constant 0 : i32
    return %arg0, %arg1, %c0_i32 : i32, i32, i32
  }
  func.func @transform_2(%arg0: i32, %arg1: i32) -> (i32, i32, i32) {
    %c0_i32 = arith.constant 0 : i32
    %c0_i32_0 = arith.constant 0 : i32
    return %arg0, %arg1, %c0_i32 : i32, i32, i32
  }
}

</mosaic_0001>

<llo_original>
// kernel: tpu_custom_call.1
$region0: #{tpu_custom_call.1}
  #allocation0 [shape = 'u32[]', space=smem, size = 0x4, offset = 0x4, fixed_abs, tag = 'smem constant byte address 0x4 - core index']
  #allocation1 [shape = 'u32[144,128]{1,0:T(1,128)}', space=vmem, size = 0x12000, scoped, tag = 'internal scratch']
  %s0 = inlined_call_operand.vmem [shape: f32[2,1,1], index: 0, kind: input, shape index: {}]
  %s1 = inlined_call_operand.vmem [shape: f32[2,1,256], index: 1, kind: input, shape index: {}]
  %s2 = inlined_call_operand.hbm [shape: f32[2,1,256], index: 2, kind: output, shape index: {}]
  %s3 = sld [smem:[#allocation0]]
  $region18: #{tpu_custom_call.1} parent=0
    _
  %s5 = ssub.s32 1, %s3
  %s6 = scalar_select 0, %s5, %s3
  $region1: #{tpu_custom_call.1} parent=0
    #allocation2 [shape = 'u8[2048]{0}', space=vmem, size = 0x800, scoped, tag = 'output window, operand 0, single buffered']
    #allocation3 [shape = 's32[1]{0}', space=sflag, size = 0x4, scoped, tag = 'scoped memory for tpu_custom_call.1']
    %7 = vsyncpa [#allocation3], 0
    // Predicated region
    $region2: #{tpu_custom_call.1} parent=1 // pred_check
      _
    $region3: #{tpu_custom_call.1} parent=1 // pred_check_branch
      %9 = sbr.rel (0) target = $region5
    $region4: #{tpu_custom_call.1} parent=1 // pred_region
      _
    $region5: #{tpu_custom_call.1} parent=1 // pred_fallthru
      _
    // Predicated region
    $region6: #{tpu_custom_call.1} parent=1 // pred_check
      _
    $region7: #{tpu_custom_call.1} parent=1 // pred_check_branch
      %11 = sbr.rel (0) target = $region9
    $region8: #{tpu_custom_call.1} parent=1 // pred_region
      _
    $region9: #{tpu_custom_call.1} parent=1 // pred_fallthru
      _
    %v12 = vld [vmem:[%s1] sm:$0x3]
    %v13 = vld [vmem:[%s1 + $0x2] sm:$0x3]
    %v14 = vld [vmem:[%s0] sm:$0x1]
    %v15 = vld [vmem:[%s0 + $0x1] sm:$0x1]
    %17 = vset.pattern.permute.xlu0 0
    %18 = vperm.xlu0 %17, %v14
    %v19 = vpop.permute.xlu0 %18
    %v21 = vlaneseq
    %v22 = vshrl.u32 %v21, 7
    %v23 = vsub.s32 0, %v22
    %v24 = vrot.slane %v19, %v23
    %26 = vset.pattern.permute.xlu0 0
    %27 = vperm.xlu0 %26, %v15
    %v28 = vpop.permute.xlu0 %27
    %v30 = vlaneseq
    %v31 = vshrl.u32 %v30, 7
    %v32 = vsub.s32 0, %v31
    %v33 = vrot.slane %v28, %v32
    %v34 = vmul.f32 %v12, %v24
    %v35 = vmul.f32 %v13, %v33
    %v36 = vlaneseq
    %vm37 = vcmp.ge.s32.totalorder %v36, 0
    %vm38 = vcmp.lt.s32.totalorder %v36, 256
    %vm39 = vmand %vm37, %vm38
    %40 = vst.msk [vmem:[#allocation2] sm:$0x3] %vm39, %v34
    %41 = vst.msk [vmem:[#allocation2 + $0x2] sm:$0x3] %vm39, %v35
    // Predicated region
    $region10: #{tpu_custom_call.1} parent=1 // pred_check
      _
    $region11: #{tpu_custom_call.1} parent=1 // pred_check_branch
      %43 = sbr.rel (0) target = $region13
    $region12: #{tpu_custom_call.1} parent=1 // pred_region
      %s45 = ssub.s32 64, 64
      %46 = vsyncadd [#allocation3], %s45
      %s47 = sshll.u32 [#allocation2], 4
      %s48 = int_to_ptr.vmem [resolvable:$true] %s47
      %53 = dma.vmem_to_hbm [thread:$0]  %s48, 64, %s2, [#allocation3], 32, 32, 2
    $region13: #{tpu_custom_call.1} parent=1 // pred_fallthru
      _
    // Predicated region
    $region14: #{tpu_custom_call.1} parent=1 // pred_check
      _
    $region15: #{tpu_custom_call.1} parent=1 // pred_check_branch
      %55 = sbr.rel (0) target = $region17
    $region16: #{tpu_custom_call.1} parent=1 // pred_region
      %56 = dma.done [#allocation3], 64
    $region17: #{tpu_custom_call.1} parent=1 // pred_fallthru
      _
    %57 = vsyncpa [#allocation3], 1

</llo_original>
